<compile_context>
chip_gen: v6e
topology: v6e:2x2x1
jax: 0.10.0
libtpu: 0.0.40
codegen_flags: <defaults>
</compile_context>

<pallas_src>
import functools

import jax
import jax.numpy as jnp
from jax import lax
from jax.experimental import pallas as pl
from jax.experimental.pallas import tpu as pltpu


# ---------------------------------------------------------------------------
# Kernels
# ---------------------------------------------------------------------------

def _resident_kernel(x_ref, w_ref, o_ref, *, num_layers):
    """One grid step == one batch tile through ALL layers.

    x_ref: (bm, N)     input activations for this batch tile
    w_ref: (L, N, N)   all layer weights, pre-transposed to (in, out) layout
    o_ref: (bm, N)     output activations for this batch tile
    """
    h = x_ref[...]
    if num_layers <= 8:
        # Small fixed L: static unroll (full LLO scheduler visibility).
        for l in range(num_layers):
            h = jnp.maximum(
                jnp.dot(h, w_ref[l], preferred_element_type=jnp.float32), 0.0)
    else:
        # Larger L: compact loop with dynamic first-axis ref indexing.
        def body(l, h):
            return jnp.maximum(
                jnp.dot(h, w_ref[l], preferred_element_type=jnp.float32), 0.0)
        h = lax.fori_loop(0, num_layers, body, h)
    # TODO(synk): per-layer std print / NaN early-break in the PyTorch forward is
    # host-side control flow; not reproduced inside the kernel.
    o_ref[...] = h.astype(o_ref.dtype)


def _streaming_kernel(x_ref, w_ref, o_ref, act_ref):
    """Per-layer weight streaming: grid = (batch tiles, layers).

    Only one (N, N) weight tile lives in VMEM (double-buffered, so the next
    layer's weight DMA overlaps the current matmul). The activation is carried
    across the 'arbitrary' layer axis in a (bm, N) VMEM scratch.
    """
    l = pl.program_id(1)

    @pl.when(l == 0)
    def _():
        act_ref[...] = x_ref[...].astype(jnp.float32)

    h = jnp.maximum(
        jnp.dot(act_ref[...], w_ref[0], preferred_element_type=jnp.float32), 0.0)
    act_ref[...] = h

    @pl.when(l == pl.num_programs(1) - 1)
    def _():
        o_ref[...] = h.astype(o_ref.dtype)


# ---------------------------------------------------------------------------
# Wrapper
# ---------------------------------------------------------------------------

def _compiler_params(est_vmem_bytes, dim_sem):
    kwargs = dict(dimension_semantics=dim_sem)
    # Default scoped VMEM is well below physical (16 MiB v5e / 32 MiB v6e / 32 of
    # 64 MiB v7x). Raise it (with headroom) once the working set needs it.
    if est_vmem_bytes > 12 * 1024 * 1024:
        kwargs["vmem_limit_bytes"] = int(min(est_vmem_bytes * 1.5, 96 * 1024 * 1024))
    return pltpu.CompilerParams(**kwargs)


def mlp_forward(x, weights, *, stream_layers=None):
    """x: (B, N) float32; weights: (L, N, N) in PyTorch (out, in) convention."""
    B, N = x.shape
    L, out_f, in_f = weights.shape
    assert out_f == N and in_f == N, "square, width-preserving layers expected"

    # One-time (out, in) -> (in, out) transpose so the kernel runs a standard MXU
    # contraction with no per-layer XLU transpose. Amortized over all tiles/calls.
    w_t = jnp.transpose(weights, (0, 2, 1))

    # Keep the feature dim a 128 multiple -> lane-dense (unmasked) output stores.
    # Zero padding is exact: padded in-rows are zero, padded out-cols stay zero.
    Np = ((N + 127) // 128) * 128
    if Np != N:
        x = jnp.pad(x, ((0, 0), (0, Np - N)))
        w_t = jnp.pad(w_t, ((0, 0), (0, Np - N), (0, Np - N)))

    # Batch tile: 256 rows for big batches (v6e/v7x 256-wide MXU, fewer ~0.35us grid
    # steps) while keeping >= 2 tiles so v7x's second TensorCore stays fed; 128 for
    # medium batches; sublane-rounded for tiny batches. Padding rows are zeros.
    if B >= 512:
        bm = 256
    elif B >= 128:
        bm = 128
    else:
        bm = max(8, ((B + 7) // 8) * 8)
    Bp = ((B + bm - 1) // bm) * bm
    if Bp != B:
        x = jnp.pad(x, ((0, Bp - B), (0, 0)))

    weight_bytes = L * Np * Np * 4
    if stream_layers is None:
        # Stream per-layer weights once the resident stack threatens scoped VMEM
        # (v7x 64 MiB physical / 32 MiB default; v5e 16 MiB default).
        stream_layers = weight_bytes > 24 * 1024 * 1024

    act_tile_bytes = bm * Np * 4

    if not stream_layers:
        # Resident path: whole (L, N, N) weight stack DMA'd once, single-buffered.
        est = weight_bytes + 4 * act_tile_bytes
        out = pl.pallas_call(
            functools.partial(_resident_kernel, num_layers=L),
            out_shape=jax.ShapeDtypeStruct((Bp, Np), x.dtype),
            grid_spec=pltpu.PrefetchScalarGridSpec(
                num_scalar_prefetch=0,
                grid=(Bp // bm,),
                in_specs=[
                    pl.BlockSpec((bm, Np), lambda i: (i, 0)),
                    # Constant block index -> DMA'd once, stays resident across all
                    # batch tiles. Buffered(1): double-buffering an invariant block
                    # only doubles its VMEM footprint.
                    pl.BlockSpec((L, Np, Np), lambda i: (0, 0, 0),
                                 pipeline_mode=pl.Buffered(1)),
                ],
                out_specs=pl.BlockSpec((bm, Np), lambda i: (i, 0)),
            ),
            compiler_params=_compiler_params(est, ("parallel",)),
        )(x, w_t)
    else:
        # Streaming path: one (N, N) weight tile at a time (double-buffered).
        est = 2 * Np * Np * 4 + 5 * act_tile_bytes
        out = pl.pallas_call(
            _streaming_kernel,
            out_shape=jax.ShapeDtypeStruct((Bp, Np), x.dtype),
            grid_spec=pltpu.PrefetchScalarGridSpec(
                num_scalar_prefetch=0,
                grid=(Bp // bm, L),
                in_specs=[
                    pl.BlockSpec((bm, Np), lambda i, l: (i, 0)),
                    pl.BlockSpec((1, Np, Np), lambda i, l: (l, 0, 0)),
                ],
                out_specs=pl.BlockSpec((bm, Np), lambda i, l: (i, 0)),
                scratch_shapes=[pltpu.VMEM((bm, Np), jnp.float32)],
            ),
            compiler_params=_compiler_params(est, ("parallel", "arbitrary")),
        )(x, w_t)

    return out[:B, :N]


def reference_forward(x, weights):
    """Pure-JAX reference matching the PyTorch forward (ReLU after every layer)."""
    for l in range(weights.shape[0]):
        x = jnp.maximum(x @ weights[l].T, 0.0)
    return x


if __name__ == "__main__":
    neural_num = 128   # features per layer
    layers = 4
    batch = 8

    key = jax.random.PRNGKey(0)
    kx, kw = jax.random.split(key)

    # Input: PyTorch driver uses torch.randn(batch, neural_num).
    x = jax.random.normal(kx, (batch, neural_num), dtype=jnp.float32)

    # Kaiming-normal init (fan_in mode, gain sqrt(2)) for each (out, in) weight.
    std = (2.0 / neural_num) ** 0.5
    weights = std * jax.random.normal(
        kw, (layers, neural_num, neural_num), dtype=jnp.float32
    )

    ref = reference_forward(x, weights)

    # Default (resident-weights) path.
    out = jax.block_until_ready(mlp_forward(x, weights))
    assert out.shape == (batch, neural_num)
    assert jnp.allclose(out, ref, atol=1e-4, rtol=1e-4)

    # Also exercise the per-layer weight-streaming path (picked automatically once
    # the weight stack would threaten VMEM, e.g. under v7x's 64 MiB).
    out_stream = jax.block_until_ready(mlp_forward(x, weights, stream_layers=True))
    assert jnp.allclose(out_stream, ref, atol=1e-4, rtol=1e-4)

    print("KERNEL_OK")
</pallas_src>

<mosaic_0001>
module attributes {stable_mosaic.version = 11 : i64} {
  func.func @_resident_kernel(%arg0: i32, %arg1: memref<8x128xf32, #tpu.memory_space<vmem>>, %arg2: memref<4x128x128xf32, #tpu.memory_space<vmem>>, %arg3: memref<8x128xf32, #tpu.memory_space<vmem>>) attributes {dimension_semantics = [#tpu.dimension_semantics<parallel>], iteration_bounds = array<i64: 1>, scalar_prefetch = 0 : i64, scratch_operands = 0 : i64, tpu.core_type = #tpu.core_type<tc>, window_params = [{transform_indices = @transform_0, window_bounds = array<i64: 8, 128>}, {pipeline_mode = #tpu.pipeline_mode<synchronous>, transform_indices = @transform_1, window_bounds = array<i64: 4, 128, 128>}, {transform_indices = @transform_2, window_bounds = array<i64: 8, 128>}]} {
    %c0 = arith.constant 0 : index
    %c0_0 = arith.constant 0 : index
    %0 = vector.load %arg1[%c0, %c0_0] : memref<8x128xf32, #tpu.memory_space<vmem>>, vector<8x128xf32>
    %c0_1 = arith.constant 0 : index
    %c0_2 = arith.constant 0 : index
    %c0_3 = arith.constant 0 : index
    %1 = vector.load %arg2[%c0_1, %c0_2, %c0_3] : memref<4x128x128xf32, #tpu.memory_space<vmem>>, vector<1x128x128xf32>
    %2 = vector.shape_cast %1 : vector<1x128x128xf32> to vector<128x128xf32>
    %cst = arith.constant dense<0.000000e+00> : vector<8x128xf32>
    %3 = tpu.matmul %0, %2, %cst {dimension_numbers = #tpu.dot_dimension_numbers<[1], [0], [0], [1], [0, 0, 1, 1], [], []>} : vector<8x128xf32>, vector<128x128xf32>, vector<8x128xf32> -> vector<8x128xf32>
    %cst_4 = arith.constant 0.000000e+00 : f32
    %4 = vector.broadcast %cst_4 : f32 to vector<8x128xf32>
    %5 = arith.maximumf %3, %4 : vector<8x128xf32>
    %c1 = arith.constant 1 : index
    %c0_5 = arith.constant 0 : index
    %c0_6 = arith.constant 0 : index
    %6 = vector.load %arg2[%c1, %c0_5, %c0_6] : memref<4x128x128xf32, #tpu.memory_space<vmem>>, vector<1x128x128xf32>
    %7 = vector.shape_cast %6 : vector<1x128x128xf32> to vector<128x128xf32>
    %cst_7 = arith.constant dense<0.000000e+00> : vector<8x128xf32>
    %8 = tpu.matmul %5, %7, %cst_7 {dimension_numbers = #tpu.dot_dimension_numbers<[1], [0], [0], [1], [0, 0, 1, 1], [], []>} : vector<8x128xf32>, vector<128x128xf32>, vector<8x128xf32> -> vector<8x128xf32>
    %cst_8 = arith.constant 0.000000e+00 : f32
    %9 = vector.broadcast %cst_8 : f32 to vector<8x128xf32>
    %10 = arith.maximumf %8, %9 : vector<8x128xf32>
    %c2 = arith.constant 2 : index
    %c0_9 = arith.constant 0 : index
    %c0_10 = arith.constant 0 : index
    %11 = vector.load %arg2[%c2, %c0_9, %c0_10] : memref<4x128x128xf32, #tpu.memory_space<vmem>>, vector<1x128x128xf32>
    %12 = vector.shape_cast %11 : vector<1x128x128xf32> to vector<128x128xf32>
    %cst_11 = arith.constant dense<0.000000e+00> : vector<8x128xf32>
    %13 = tpu.matmul %10, %12, %cst_11 {dimension_numbers = #tpu.dot_dimension_numbers<[1], [0], [0], [1], [0, 0, 1, 1], [], []>} : vector<8x128xf32>, vector<128x128xf32>, vector<8x128xf32> -> vector<8x128xf32>
    %cst_12 = arith.constant 0.000000e+00 : f32
    %14 = vector.broadcast %cst_12 : f32 to vector<8x128xf32>
    %15 = arith.maximumf %13, %14 : vector<8x128xf32>
    %c3 = arith.constant 3 : index
    %c0_13 = arith.constant 0 : index
    %c0_14 = arith.constant 0 : index
    %16 = vector.load %arg2[%c3, %c0_13, %c0_14] : memref<4x128x128xf32, #tpu.memory_space<vmem>>, vector<1x128x128xf32>
    %17 = vector.shape_cast %16 : vector<1x128x128xf32> to vector<128x128xf32>
    %cst_15 = arith.constant dense<0.000000e+00> : vector<8x128xf32>
    %18 = tpu.matmul %15, %17, %cst_15 {dimension_numbers = #tpu.dot_dimension_numbers<[1], [0], [0], [1], [0, 0, 1, 1], [], []>} : vector<8x128xf32>, vector<128x128xf32>, vector<8x128xf32> -> vector<8x128xf32>
    %cst_16 = arith.constant 0.000000e+00 : f32
    %19 = vector.broadcast %cst_16 : f32 to vector<8x128xf32>
    %20 = arith.maximumf %18, %19 : vector<8x128xf32>
    %c0_17 = arith.constant 0 : index
    %c0_18 = arith.constant 0 : index
    %21 = vector.load %arg3[%c0_17, %c0_18] : memref<8x128xf32, #tpu.memory_space<vmem>>, vector<8x128xf32>
    tpu.vector_store %arg3[%c0_17, %c0_18], %20 {strides = array<i32>} : memref<8x128xf32, #tpu.memory_space<vmem>>, vector<8x128xf32>,
    return
  }
  func.func @transform_0(%arg0: i32) -> (i32, i32) {
    %c0_i32 = arith.constant 0 : i32
    %c0_i32_0 = arith.constant 0 : i32
    return %arg0, %c0_i32 : i32, i32
  }
  func.func @transform_1(%arg0: i32) -> (i32, i32, i32) {
    %c0_i32 = arith.constant 0 : i32
    %c0_i32_0 = arith.constant 0 : i32
    %c0_i32_1 = arith.constant 0 : i32
    %c0_i32_2 = arith.constant 0 : i32
    return %c0_i32, %c0_i32_0, %c0_i32_1 : i32, i32, i32
  }
  func.func @transform_2(%arg0: i32) -> (i32, i32) {
    %c0_i32 = arith.constant 0 : i32
    %c0_i32_0 = arith.constant 0 : i32
    return %arg0, %c0_i32 : i32, i32
  }
}

</mosaic_0001>

<llo_original>
// kernel: tpu_custom_call.1
$region0: #{tpu_custom_call.1}
  #allocation0 [shape = 'u32[]', space=smem, size = 0x4, offset = 0x4, fixed_abs, tag = 'smem constant byte address 0x4 - core index']
  #allocation1 [shape = 'u32[144,128]{1,0:T(1,128)}', space=vmem, size = 0x12000, scoped, tag = 'internal scratch']
  %s0 = inlined_call_operand.hbm [shape: f32[8,128], index: 0, kind: input, shape index: {}]
  %s1 = inlined_call_operand.hbm [shape: f32[4,128,128], index: 1, kind: input, shape index: {}]
  %s2 = inlined_call_operand.hbm [shape: f32[8,128], index: 2, kind: output, shape index: {}]
  %s3 = sld [smem:[#allocation0]]
  $region26: #{tpu_custom_call.1} parent=0
    _
  %s5 = ssub.s32 1, %s3
  %s6 = scalar_select 0, %s5, %s3
  $region1: #{tpu_custom_call.1} parent=0
    #allocation2 [shape = 'u8[4096]{0}', space=vmem, size = 0x1000, scoped, tag = 'input window, operand 0, single buffered']
    #allocation3 [shape = 's32[1]{0}', space=sflag, size = 0x4, scoped, tag = 'scoped memory for tpu_custom_call.1']
    #allocation4 [shape = 's32[1]{0}', space=sflag, size = 0x4, scoped, tag = 'scoped memory for tpu_custom_call.1']
    #allocation5 [shape = 'u8[262144]{0}', space=vmem, size = 0x40000, scoped, tag = 'input window, operand 1, single buffered']
    #allocation6 [shape = 's32[1]{0}', space=sflag, size = 0x4, scoped, tag = 'scoped memory for tpu_custom_call.1']
    #allocation7 [shape = 'u8[4096]{0}', space=vmem, size = 0x1000, scoped, tag = 'output window, operand 0, single buffered']
    %7 = vsyncpa [#allocation3], 0
    %8 = vsyncpa [#allocation6], 0
    %9 = vsyncpa [#allocation4], 0
    // Predicated region
    $region2: #{tpu_custom_call.1} parent=1 // pred_check
      _
    $region3: #{tpu_custom_call.1} parent=1 // pred_check_branch
      %11 = sbr.rel (0) target = $region5
    $region4: #{tpu_custom_call.1} parent=1 // pred_region
      %s13 = ssub.s32 128, 128
      %14 = vsyncadd [#allocation3], %s13
      %s16 = sshll.u32 [#allocation2], 4
      %s17 = int_to_ptr.vmem [resolvable:$true] %s16
      %19 = dma.hbm_to_vmem [thread:$0]  %s0, 128, %s17, [#allocation3]
    $region5: #{tpu_custom_call.1} parent=1 // pred_fallthru
      _
    // Predicated region
    $region6: #{tpu_custom_call.1} parent=1 // pred_check
      _
    $region7: #{tpu_custom_call.1} parent=1 // pred_check_branch
      %21 = sbr.rel (0) target = $region9
    $region8: #{tpu_custom_call.1} parent=1 // pred_region
      %s23 = ssub.s32 8192, 8192
      %24 = vsyncadd [#allocation6], %s23
      %s25 = sshll.u32 [#allocation5], 4
      %s26 = int_to_ptr.vmem [resolvable:$true] %s25
      %31 = dma.hbm_to_vmem [thread:$0]  %s1, 8192, %s26, [#allocation6], 128, 128, 8
    $region9: #{tpu_custom_call.1} parent=1 // pred_fallthru
      _
    // Predicated region
    $region10: #{tpu_custom_call.1} parent=1 // pred_check
      _
    $region11: #{tpu_custom_call.1} parent=1 // pred_check_branch
      %33 = sbr.rel (0) target = $region13
    $region12: #{tpu_custom_call.1} parent=1 // pred_region
      %34 = dma.done [#allocation3], 128
    $region13: #{tpu_custom_call.1} parent=1 // pred_fallthru
      _
    // Predicated region
    $region14: #{tpu_custom_call.1} parent=1 // pred_check
      _
    $region15: #{tpu_custom_call.1} parent=1 // pred_check_branch
      %36 = sbr.rel (0) target = $region17
    $region16: #{tpu_custom_call.1} parent=1 // pred_region
      %37 = dma.done [#allocation6], 8192
    $region17: #{tpu_custom_call.1} parent=1 // pred_fallthru
      _
    %v38 = vld [vmem:[#allocation2] sm:$0xff]
    %v39 = vld [vmem:[#allocation5] sm:$0xff]
    %v40 = vld [vmem:[#allocation5 + $0x8] sm:$0xff]
    %v41 = vld [vmem:[#allocation5 + $0x10] sm:$0xff]
    %v42 = vld [vmem:[#allocation5 + $0x18] sm:$0xff]
    %v43 = vld [vmem:[#allocation5 + $0x20] sm:$0xff]
    %v44 = vld [vmem:[#allocation5 + $0x28] sm:$0xff]
    %v45 = vld [vmem:[#allocation5 + $0x30] sm:$0xff]
    %v46 = vld [vmem:[#allocation5 + $0x38] sm:$0xff]
    %v47 = vld [vmem:[#allocation5 + $0x40] sm:$0xff]
    %v48 = vld [vmem:[#allocation5 + $0x48] sm:$0xff]
    %v49 = vld [vmem:[#allocation5 + $0x50] sm:$0xff]
    %v50 = vld [vmem:[#allocation5 + $0x58] sm:$0xff]
    %v51 = vld [vmem:[#allocation5 + $0x60] sm:$0xff]
    %v52 = vld [vmem:[#allocation5 + $0x68] sm:$0xff]
    %v53 = vld [vmem:[#allocation5 + $0x70] sm:$0xff]
    %v54 = vld [vmem:[#allocation5 + $0x78] sm:$0xff]
    %55 = vmatprep.subr.mxu0 0.0
    %56 = vmatpush1.msra.mxu0 %v54
    %57 = vmatprep.subr.mxu0 0.0
    %58 = vmatpush1.msra.mxu0 %v53
    %59 = vmatprep.subr.mxu0 0.0
    %60 = vmatpush1.msra.mxu0 %v52
    %61 = vmatprep.subr.mxu0 0.0
    %62 = vmatpush1.msra.mxu0 %v51
    %63 = vmatprep.subr.mxu0 0.0
    %64 = vmatpush1.msra.mxu0 %v50
    %65 = vmatprep.subr.mxu0 0.0
    %66 = vmatpush1.msra.mxu0 %v49
    %67 = vmatprep.subr.mxu0 0.0
    %68 = vmatpush1.msra.mxu0 %v48
    %69 = vmatprep.subr.mxu0 0.0
    %70 = vmatpush1.msra.mxu0 %v47
    %71 = vmatprep.subr.mxu0 0.0
    %72 = vmatpush1.msra.mxu0 %v46
    %73 = vmatprep.subr.mxu0 0.0
    %74 = vmatpush1.msra.mxu0 %v45
    %75 = vmatprep.subr.mxu0 0.0
    %76 = vmatpush1.msra.mxu0 %v44
    %77 = vmatprep.subr.mxu0 0.0
    %78 = vmatpush1.msra.mxu0 %v43
    %79 = vmatprep.subr.mxu0 0.0
    %80 = vmatpush1.msra.mxu0 %v42
    %81 = vmatprep.subr.mxu0 0.0
    %82 = vmatpush1.msra.mxu0 %v41
    %83 = vmatprep.subr.mxu0 0.0
    %84 = vmatpush1.msra.mxu0 %v40
    %85 = vmatprep.subr.mxu0 0.0
    %86 = vmatpush1.msra.mxu0 %v39
    %87 = vmatprep.subr.mxu0 0.0
    %88 = vmatpush2.msra.mxu0 0.0
    %89 = vmatprep.subr.mxu0 0.0
    %90 = vmatpush2.msra.mxu0 0.0
    %91 = vmatprep.subr.mxu0 0.0
    %92 = vmatpush2.msra.mxu0 0.0
    %93 = vmatprep.subr.mxu0 0.0
    %94 = vmatpush2.msra.mxu0 0.0
    %95 = vmatprep.subr.mxu0 0.0
    %96 = vmatpush2.msra.mxu0 0.0
    %97 = vmatprep.subr.mxu0 0.0
    %98 = vmatpush2.msra.mxu0 0.0
    %99 = vmatprep.subr.mxu0 0.0
    %100 = vmatpush2.msra.mxu0 0.0
    %101 = vmatprep.subr.mxu0 0.0
    %102 = vmatpush2.msra.mxu0 0.0
    %103 = vmatprep.subr.mxu0 0.0
    %104 = vmatpush2.msra.mxu0 0.0
    %105 = vmatprep.subr.mxu0 0.0
    %106 = vmatpush2.msra.mxu0 0.0
    %107 = vmatprep.subr.mxu0 0.0
    %108 = vmatpush2.msra.mxu0 0.0
    %109 = vmatprep.subr.mxu0 0.0
    %110 = vmatpush2.msra.mxu0 0.0
    %111 = vmatprep.subr.mxu0 0.0
    %112 = vmatpush2.msra.mxu0 0.0
    %113 = vmatprep.subr.mxu0 0.0
    %114 = vmatpush2.msra.mxu0 0.0
    %115 = vmatprep.subr.mxu0 0.0
    %116 = vmatpush2.msra.mxu0 0.0
    %117 = vmatprep.subr.mxu0 0.0
    %118 = vmatpush2.msra.mxu0 0.0
    %119 = vmatprep.mubr.f32.mxu0 0.0
    %120 = vmatmul.mubr.f32.gmra.mxu0 %v38
    %v121 = vpop.f32.mrf.mxu0
    %v122 = vadd.f32 0.0, %v121
    %v123 = vpop.f32.mrf.mxu0
    %124 = vdwg.mxu0
    %v125 = vmax.f32 %v122, 0.0
    %s126 = scalar_lea.vmem [#allocation5], 128
    %v127 = vld [vmem:[%s126] sm:$0xff]
    %v128 = vld [vmem:[%s126 + $0x8] sm:$0xff]
    %v129 = vld [vmem:[%s126 + $0x10] sm:$0xff]
    %v130 = vld [vmem:[%s126 + $0x18] sm:$0xff]
    %v131 = vld [vmem:[%s126 + $0x20] sm:$0xff]
    %v132 = vld [vmem:[%s126 + $0x28] sm:$0xff]
    %v133 = vld [vmem:[%s126 + $0x30] sm:$0xff]
    %v134 = vld [vmem:[%s126 + $0x38] sm:$0xff]
    %v135 = vld [vmem:[%s126 + $0x40] sm:$0xff]
    %v136 = vld [vmem:[%s126 + $0x48] sm:$0xff]
    %v137 = vld [vmem:[%s126 + $0x50] sm:$0xff]
    %v138 = vld [vmem:[%s126 + $0x58] sm:$0xff]
    %v139 = vld [vmem:[%s126 + $0x60] sm:$0xff]
    %v140 = vld [vmem:[%s126 + $0x68] sm:$0xff]
    %v141 = vld [vmem:[%s126 + $0x70] sm:$0xff]
    %v142 = vld [vmem:[%s126 + $0x78] sm:$0xff]
    %143 = vmatprep.subr.mxu0 0.0
    %144 = vmatpush1.msra.mxu0 %v142
    %145 = vmatprep.subr.mxu0 0.0
    %146 = vmatpush1.msra.mxu0 %v141
    %147 = vmatprep.subr.mxu0 0.0
    %148 = vmatpush1.msra.mxu0 %v140
    %149 = vmatprep.subr.mxu0 0.0
    %150 = vmatpush1.msra.mxu0 %v139
    %151 = vmatprep.subr.mxu0 0.0
    %152 = vmatpush1.msra.mxu0 %v138
    %153 = vmatprep.subr.mxu0 0.0
    %154 = vmatpush1.msra.mxu0 %v137
    %155 = vmatprep.subr.mxu0 0.0
    %156 = vmatpush1.msra.mxu0 %v136
    %157 = vmatprep.subr.mxu0 0.0
    %158 = vmatpush1.msra.mxu0 %v135
    %159 = vmatprep.subr.mxu0 0.0
    %160 = vmatpush1.msra.mxu0 %v134
    %161 = vmatprep.subr.mxu0 0.0
    %162 = vmatpush1.msra.mxu0 %v133
    %163 = vmatprep.subr.mxu0 0.0
    %164 = vmatpush1.msra.mxu0 %v132
    %165 = vmatprep.subr.mxu0 0.0
    %166 = vmatpush1.msra.mxu0 %v131
    %167 = vmatprep.subr.mxu0 0.0
    %168 = vmatpush1.msra.mxu0 %v130
    %169 = vmatprep.subr.mxu0 0.0
    %170 = vmatpush1.msra.mxu0 %v129
    %171 = vmatprep.subr.mxu0 0.0
    %172 = vmatpush1.msra.mxu0 %v128
    %173 = vmatprep.subr.mxu0 0.0
    %174 = vmatpush1.msra.mxu0 %v127
    %175 = vmatprep.subr.mxu0 0.0
    %176 = vmatpush2.msra.mxu0 0.0
    %177 = vmatprep.subr.mxu0 0.0
    %178 = vmatpush2.msra.mxu0 0.0
    %179 = vmatprep.subr.mxu0 0.0
    %180 = vmatpush2.msra.mxu0 0.0
    %181 = vmatprep.subr.mxu0 0.0
    %182 = vmatpush2.msra.mxu0 0.0
    %183 = vmatprep.subr.mxu0 0.0
    %184 = vmatpush2.msra.mxu0 0.0
    %185 = vmatprep.subr.mxu0 0.0
    %186 = vmatpush2.msra.mxu0 0.0
    %187 = vmatprep.subr.mxu0 0.0
    %188 = vmatpush2.msra.mxu0 0.0
    %189 = vmatprep.subr.mxu0 0.0
    %190 = vmatpush2.msra.mxu0 0.0
    %191 = vmatprep.subr.mxu0 0.0
    %192 = vmatpush2.msra.mxu0 0.0
    %193 = vmatprep.subr.mxu0 0.0
    %194 = vmatpush2.msra.mxu0 0.0
    %195 = vmatprep.subr.mxu0 0.0
    %196 = vmatpush2.msra.mxu0 0.0
    %197 = vmatprep.subr.mxu0 0.0
    %198 = vmatpush2.msra.mxu0 0.0
    %199 = vmatprep.subr.mxu0 0.0
    %200 = vmatpush2.msra.mxu0 0.0
    %201 = vmatprep.subr.mxu0 0.0
    %202 = vmatpush2.msra.mxu0 0.0
    %203 = vmatprep.subr.mxu0 0.0
    %204 = vmatpush2.msra.mxu0 0.0
    %205 = vmatprep.subr.mxu0 0.0
    %206 = vmatpush2.msra.mxu0 0.0
    %207 = vmatprep.mubr.f32.mxu0 0.0
    %208 = vmatmul.mubr.f32.gmra.mxu0 %v125
    %v209 = vpop.f32.mrf.mxu0
    %v210 = vadd.f32 0.0, %v209
    %v211 = vpop.f32.mrf.mxu0
    %212 = vdwg.mxu0
    %v213 = vmax.f32 %v210, 0.0
    %s214 = scalar_lea.vmem [#allocation5], 256
    %v215 = vld [vmem:[%s214] sm:$0xff]
    %v216 = vld [vmem:[%s214 + $0x8] sm:$0xff]
    %v217 = vld [vmem:[%s214 + $0x10] sm:$0xff]
    %v218 = vld [vmem:[%s214 + $0x18] sm:$0xff]
    %v219 = vld [vmem:[%s214 + $0x20] sm:$0xff]
    %v220 = vld [vmem:[%s214 + $0x28] sm:$0xff]
    %v221 = vld [vmem:[%s214 + $0x30] sm:$0xff]
    %v222 = vld [vmem:[%s214 + $0x38] sm:$0xff]
    %v223 = vld [vmem:[%s214 + $0x40] sm:$0xff]
    %v224 = vld [vmem:[%s214 + $0x48] sm:$0xff]
    %v225 = vld [vmem:[%s214 + $0x50] sm:$0xff]
    %v226 = vld [vmem:[%s214 + $0x58] sm:$0xff]
    %v227 = vld [vmem:[%s214 + $0x60] sm:$0xff]
    %v228 = vld [vmem:[%s214 + $0x68] sm:$0xff]
    %v229 = vld [vmem:[%s214 + $0x70] sm:$0xff]
    %v230 = vld [vmem:[%s214 + $0x78] sm:$0xff]
    %231 = vmatprep.subr.mxu0 0.0
    %232 = vmatpush1.msra.mxu0 %v230
    %233 = vmatprep.subr.mxu0 0.0
    %234 = vmatpush1.msra.mxu0 %v229
    %235 = vmatprep.subr.mxu0 0.0
    %236 = vmatpush1.msra.mxu0 %v228
    %237 = vmatprep.subr.mxu0 0.0
    %238 = vmatpush1.msra.mxu0 %v227
    %239 = vmatprep.subr.mxu0 0.0
    %240 = vmatpush1.msra.mxu0 %v226
    %241 = vmatprep.subr.mxu0 0.0
    %242 = vmatpush1.msra.mxu0 %v225
    %243 = vmatprep.subr.mxu0 0.0
    %244 = vmatpush1.msra.mxu0 %v224
    %245 = vmatprep.subr.mxu0 0.0
    %246 = vmatpush1.msra.mxu0 %v223
    %247 = vmatprep.subr.mxu0 0.0
    %248 = vmatpush1.msra.mxu0 %v222
    %249 = vmatprep.subr.mxu0 0.0
    %250 = vmatpush1.msra.mxu0 %v221
    %251 = vmatprep.subr.mxu0 0.0
    %252 = vmatpush1.msra.mxu0 %v220
    %253 = vmatprep.subr.mxu0 0.0
    %254 = vmatpush1.msra.mxu0 %v219
    %255 = vmatprep.subr.mxu0 0.0
    %256 = vmatpush1.msra.mxu0 %v218
    %257 = vmatprep.subr.mxu0 0.0
    %258 = vmatpush1.msra.mxu0 %v217
    %259 = vmatprep.subr.mxu0 0.0
    %260 = vmatpush1.msra.mxu0 %v216
    %261 = vmatprep.subr.mxu0 0.0
    %262 = vmatpush1.msra.mxu0 %v215
    %263 = vmatprep.subr.mxu0 0.0
    %264 = vmatpush2.msra.mxu0 0.0
    %265 = vmatprep.subr.mxu0 0.0
    %266 = vmatpush2.msra.mxu0 0.0
    %267 = vmatprep.subr.mxu0 0.0
    %268 = vmatpush2.msra.mxu0 0.0
    %269 = vmatprep.subr.mxu0 0.0
    %270 = vmatpush2.msra.mxu0 0.0
    %271 = vmatprep.subr.mxu0 0.0
    %272 = vmatpush2.msra.mxu0 0.0
    %273 = vmatprep.subr.mxu0 0.0
    %274 = vmatpush2.msra.mxu0 0.0
    %275 = vmatprep.subr.mxu0 0.0
    %276 = vmatpush2.msra.mxu0 0.0
    %277 = vmatprep.subr.mxu0 0.0
    %278 = vmatpush2.msra.mxu0 0.0
    %279 = vmatprep.subr.mxu0 0.0
    %280 = vmatpush2.msra.mxu0 0.0
    %281 = vmatprep.subr.mxu0 0.0
    %282 = vmatpush2.msra.mxu0 0.0
    %283 = vmatprep.subr.mxu0 0.0
    %284 = vmatpush2.msra.mxu0 0.0
    %285 = vmatprep.subr.mxu0 0.0
    %286 = vmatpush2.msra.mxu0 0.0
    %287 = vmatprep.subr.mxu0 0.0
    %288 = vmatpush2.msra.mxu0 0.0
    %289 = vmatprep.subr.mxu0 0.0
    %290 = vmatpush2.msra.mxu0 0.0
    %291 = vmatprep.subr.mxu0 0.0
    %292 = vmatpush2.msra.mxu0 0.0
    %293 = vmatprep.subr.mxu0 0.0
    %294 = vmatpush2.msra.mxu0 0.0
    %295 = vmatprep.mubr.f32.mxu0 0.0
    %296 = vmatmul.mubr.f32.gmra.mxu0 %v213
    %v297 = vpop.f32.mrf.mxu0
    %v298 = vadd.f32 0.0, %v297
    %v299 = vpop.f32.mrf.mxu0
    %300 = vdwg.mxu0
    %v301 = vmax.f32 %v298, 0.0
    %s302 = scalar_lea.vmem [#allocation5], 384
    %v303 = vld [vmem:[%s302] sm:$0xff]
    %v304 = vld [vmem:[%s302 + $0x8] sm:$0xff]
    %v305 = vld [vmem:[%s302 + $0x10] sm:$0xff]
    %v306 = vld [vmem:[%s302 + $0x18] sm:$0xff]
    %v307 = vld [vmem:[%s302 + $0x20] sm:$0xff]
    %v308 = vld [vmem:[%s302 + $0x28] sm:$0xff]
    %v309 = vld [vmem:[%s302 + $0x30] sm:$0xff]
    %v310 = vld [vmem:[%s302 + $0x38] sm:$0xff]
    %v311 = vld [vmem:[%s302 + $0x40] sm:$0xff]
    %v312 = vld [vmem:[%s302 + $0x48] sm:$0xff]
    %v313 = vld [vmem:[%s302 + $0x50] sm:$0xff]
    %v314 = vld [vmem:[%s302 + $0x58] sm:$0xff]
    %v315 = vld [vmem:[%s302 + $0x60] sm:$0xff]
    %v316 = vld [vmem:[%s302 + $0x68] sm:$0xff]
    %v317 = vld [vmem:[%s302 + $0x70] sm:$0xff]
    %v318 = vld [vmem:[%s302 + $0x78] sm:$0xff]
    %319 = vmatprep.subr.mxu0 0.0
    %320 = vmatpush1.msra.mxu0 %v318
    %321 = vmatprep.subr.mxu0 0.0
    %322 = vmatpush1.msra.mxu0 %v317
    %323 = vmatprep.subr.mxu0 0.0
    %324 = vmatpush1.msra.mxu0 %v316
    %325 = vmatprep.subr.mxu0 0.0
    %326 = vmatpush1.msra.mxu0 %v315
    %327 = vmatprep.subr.mxu0 0.0
    %328 = vmatpush1.msra.mxu0 %v314
    %329 = vmatprep.subr.mxu0 0.0
    %330 = vmatpush1.msra.mxu0 %v313
    %331 = vmatprep.subr.mxu0 0.0
    %332 = vmatpush1.msra.mxu0 %v312
    %333 = vmatprep.subr.mxu0 0.0
    %334 = vmatpush1.msra.mxu0 %v311
    %335 = vmatprep.subr.mxu0 0.0
    %336 = vmatpush1.msra.mxu0 %v310
    %337 = vmatprep.subr.mxu0 0.0
    %338 = vmatpush1.msra.mxu0 %v309
    %339 = vmatprep.subr.mxu0 0.0
    %340 = vmatpush1.msra.mxu0 %v308
    %341 = vmatprep.subr.mxu0 0.0
    %342 = vmatpush1.msra.mxu0 %v307
    %343 = vmatprep.subr.mxu0 0.0
    %344 = vmatpush1.msra.mxu0 %v306
    %345 = vmatprep.subr.mxu0 0.0
    %346 = vmatpush1.msra.mxu0 %v305
    %347 = vmatprep.subr.mxu0 0.0
    %348 = vmatpush1.msra.mxu0 %v304
    %349 = vmatprep.subr.mxu0 0.0
    %350 = vmatpush1.msra.mxu0 %v303
    %351 = vmatprep.subr.mxu0 0.0
    %352 = vmatpush2.msra.mxu0 0.0
    %353 = vmatprep.subr.mxu0 0.0
    %354 = vmatpush2.msra.mxu0 0.0
    %355 = vmatprep.subr.mxu0 0.0
    %356 = vmatpush2.msra.mxu0 0.0
    %357 = vmatprep.subr.mxu0 0.0
    %358 = vmatpush2.msra.mxu0 0.0
    %359 = vmatprep.subr.mxu0 0.0
    %360 = vmatpush2.msra.mxu0 0.0
    %361 = vmatprep.subr.mxu0 0.0
    %362 = vmatpush2.msra.mxu0 0.0
    %363 = vmatprep.subr.mxu0 0.0
    %364 = vmatpush2.msra.mxu0 0.0
    %365 = vmatprep.subr.mxu0 0.0
    %366 = vmatpush2.msra.mxu0 0.0
    %367 = vmatprep.subr.mxu0 0.0
    %368 = vmatpush2.msra.mxu0 0.0
    %369 = vmatprep.subr.mxu0 0.0
    %370 = vmatpush2.msra.mxu0 0.0
    %371 = vmatprep.subr.mxu0 0.0
    %372 = vmatpush2.msra.mxu0 0.0
    %373 = vmatprep.subr.mxu0 0.0
    %374 = vmatpush2.msra.mxu0 0.0
    %375 = vmatprep.subr.mxu0 0.0
    %376 = vmatpush2.msra.mxu0 0.0
    %377 = vmatprep.subr.mxu0 0.0
    %378 = vmatpush2.msra.mxu0 0.0
    %379 = vmatprep.subr.mxu0 0.0
    %380 = vmatpush2.msra.mxu0 0.0
    %381 = vmatprep.subr.mxu0 0.0
    %382 = vmatpush2.msra.mxu0 0.0
    %383 = vmatprep.mubr.f32.mxu0 0.0
    %384 = vmatmul.mubr.f32.gmra.mxu0 %v301
    %v385 = vpop.f32.mrf.mxu0
    %v386 = vadd.f32 0.0, %v385
    %v387 = vpop.f32.mrf.mxu0
    %388 = vdwg.mxu0
    %v389 = vmax.f32 %v386, 0.0
    %390 = vst [vmem:[#allocation7] sm:$0xff] %v389
    // Predicated region
    $region18: #{tpu_custom_call.1} parent=1 // pred_check
      _
    $region19: #{tpu_custom_call.1} parent=1 // pred_check_branch
      %392 = sbr.rel (0) target = $region21
    $region20: #{tpu_custom_call.1} parent=1 // pred_region
      %s394 = ssub.s32 128, 128
      %395 = vsyncadd [#allocation4], %s394
      %s397 = sshll.u32 [#allocation7], 4
      %s398 = int_to_ptr.vmem [resolvable:$true] %s397
      %400 = dma.vmem_to_hbm [thread:$0]  %s398, 128, %s2, [#allocation4]
    $region21: #{tpu_custom_call.1} parent=1 // pred_fallthru
      _
    // Predicated region
    $region22: #{tpu_custom_call.1} parent=1 // pred_check
      _
    $region23: #{tpu_custom_call.1} parent=1 // pred_check_branch
      %402 = sbr.rel (0) target = $region25
    $region24: #{tpu_custom_call.1} parent=1 // pred_region
      %403 = dma.done [#allocation4], 128
    $region25: #{tpu_custom_call.1} parent=1 // pred_fallthru
      _
    %404 = vsyncpa [#allocation3], 1
    %405 = vsyncpa [#allocation6], 1
    %406 = vsyncpa [#allocation4], 1

</llo_original>
